<compile_context>
chip_gen: v5e
topology: v5e:2x2
jax: 0.10.0
libtpu: 0.0.40
codegen_flags: <defaults>
</compile_context>

<pallas_src>
import math

import jax
import jax.numpy as jnp
from jax.experimental import pallas as pl
from jax.experimental.pallas import tpu as pltpu

# ---------------------------------------------------------------------------
# Model hyper-parameters (synthetic, deterministic)
# ---------------------------------------------------------------------------
N = 128               # number of graph nodes (rows of A)
INPUT_DIM = 128       # adjacency row dimension (A is N x INPUT_DIM)
HIDDEN_LAYERS = [64, 32]
ALPHA = 1e-2
BETA = 5.0
PAD = 128             # lane-aligned width every layer is padded to


# ---------------------------------------------------------------------------
# Kernel
# ---------------------------------------------------------------------------
def _make_kernel(alpha: float, beta: float):
    two_alpha = 2.0 * float(alpha)
    beta_sq = float(beta) ** 2

    def sdne_kernel(a_ref, l_ref, w_ref, out_ref):
        A = a_ref[...]            # (N, D)           f32
        L = l_ref[...]            # (N, N)           f32
        bias = w_ref[4]           # (PAD, PAD); rows 0-3 hold the 4 biases (zero-padded)

        # ----- encoder: Linear -> ReLU -> Linear -> ReLU (all padded to PAD lanes) -----
        h = jnp.maximum(
            jnp.dot(A, w_ref[0], preferred_element_type=jnp.float32) + bias[0:1], 0.0)
        Y = jnp.maximum(
            jnp.dot(h, w_ref[1], preferred_element_type=jnp.float32) + bias[1:2], 0.0)
        # (N, PAD): cols >= hidden2 are exactly 0

        # ----- decoder: Linear -> ReLU -> Linear -> ReLU -----
        d = jnp.maximum(
            jnp.dot(Y, w_ref[2], preferred_element_type=jnp.float32) + bias[2:3], 0.0)
        A_hat = jnp.maximum(
            jnp.dot(d, w_ref[3], preferred_element_type=jnp.float32) + bias[3:4], 0.0)

        # ----- 2nd-order (reconstruction) loss pieces -----
        mask_f = jnp.where(A != 0.0, 1.0, 0.0)                       # (N, D)
        diff = A - A_hat
        sq = mask_f * (diff * diff)                                  # where(A!=0, diff^2, 0)

        # ----- 1st-order (Laplacian) loss: alpha*2*trace(Y^T L Y) = 2*alpha*sum(Y*(L@Y)) -----
        LY = jnp.dot(L, Y, preferred_element_type=jnp.float32)       # (N, PAD)
        yly = Y * LY                                                 # padded cols contribute 0

        # nnz computed in-kernel (one XLU reduction); guard against all-zero A.
        s_mask = jnp.sum(jnp.sum(mask_f, axis=1, keepdims=True))
        scale = jnp.float32(beta_sq) / jnp.maximum(s_mask, 1.0)

        # Single fused cross-lane reduction for both loss terms.
        out_ref[0, 0] = jnp.sum(scale * sq + jnp.float32(two_alpha) * yly)

    return sdne_kernel


# ---------------------------------------------------------------------------
# One-time parameter packing (outside the per-call path)
# ---------------------------------------------------------------------------
def pack_params(params, pad=PAD):
    """Zero-pad each (in,out) weight to (pad,pad); stack biases into page 4 rows 0..3."""
    assert len(params) <= pad
    pages = []
    for W, b in params:
        assert W.shape[0] <= pad and W.shape[1] <= pad, "layer dim exceeds PAD"
        pages.append(jnp.pad(W, ((0, pad - W.shape[0]), (0, pad - W.shape[1]))))
    bias_rows = jnp.stack(
        [jnp.pad(b.reshape(-1), (0, pad - b.shape[-1])) for _, b in params])   # (4, pad)
    bias_page = jnp.pad(bias_rows, ((0, pad - bias_rows.shape[0]), (0, 0)))    # (pad, pad)
    return jnp.stack(pages + [bias_page]).astype(jnp.float32)                  # (5, pad, pad)


# ---------------------------------------------------------------------------
# Jitted forward wrapper
# ---------------------------------------------------------------------------
def build_sdne_forward(alpha=ALPHA, beta=BETA):
    kernel = _make_kernel(alpha, beta)

    def full(shape):
        return pl.BlockSpec(shape, lambda: tuple(0 for _ in shape))

    @jax.jit
    def forward(A, L, w_slab):
        loss = pl.pallas_call(
            kernel,
            out_shape=jax.ShapeDtypeStruct((1, 1), jnp.float32),
            in_specs=[
                full(A.shape),        # A       (N, D)
                full(L.shape),        # L       (N, N)
                full(w_slab.shape),   # packed weights + biases (5, 128, 128)
            ],
            out_specs=pl.BlockSpec(memory_space=pltpu.MemorySpace.SMEM),
            compiler_params=pltpu.CompilerParams(vmem_limit_bytes=8 << 20),
        )(A, L, w_slab)
        return loss[0, 0]

    return forward


# ---------------------------------------------------------------------------
# Deterministic parameter init (PyTorch Linear default: U(-1/sqrt(fan_in), +))
# Weights stored as (in_dim, out_dim), biases as (1, out_dim).
# ---------------------------------------------------------------------------
def init_linear(key, in_dim, out_dim):
    k_w, k_b = jax.random.split(key)
    bound = 1.0 / math.sqrt(in_dim)
    W = jax.random.uniform(k_w, (in_dim, out_dim), jnp.float32, -bound, bound)
    b = jax.random.uniform(k_b, (1, out_dim), jnp.float32, -bound, bound)
    return W, b


def init_params(key, input_dim, hidden_layers):
    dims_enc = [input_dim] + list(hidden_layers)
    dims_dec = [hidden_layers[-1]] + list(reversed(hidden_layers[:-1])) + [input_dim]
    params = []
    for i in range(len(dims_enc) - 1):
        key, sub = jax.random.split(key)
        params.append(init_linear(sub, dims_enc[i], dims_enc[i + 1]))
    for i in range(len(dims_dec) - 1):
        key, sub = jax.random.split(key)
        params.append(init_linear(sub, dims_dec[i], dims_dec[i + 1]))
    return params


# ---------------------------------------------------------------------------
# Pure-JAX reference (unpadded weights) for a correctness check
# ---------------------------------------------------------------------------
def sdne_reference(A, L, params, alpha, beta):
    (w_e1, b_e1), (w_e2, b_e2), (w_d1, b_d1), (w_d2, b_d2) = params
    Y = jnp.maximum(A @ w_e1 + b_e1, 0.0)
    Y = jnp.maximum(Y @ w_e2 + b_e2, 0.0)
    d = jnp.maximum(Y @ w_d1 + b_d1, 0.0)
    A_hat = jnp.maximum(d @ w_d2 + b_d2, 0.0)
    mask = (A != 0.0)
    beta_matrix = jnp.where(mask, beta, 1.0)
    loss_2nd = jnp.sum(mask * ((A - A_hat) * beta_matrix) ** 2) / jnp.sum(mask)
    loss_1st = alpha * 2.0 * jnp.trace(Y.T @ L @ Y)
    return loss_2nd + loss_1st


if __name__ == "__main__":
    assert INPUT_DIM == N, "L = diag(deg) - A requires a square adjacency (INPUT_DIM == N)"

    key = jax.random.PRNGKey(0)
    k_a, k_w, k_p = jax.random.split(key, 3)

    # Sparse-ish adjacency (N x INPUT_DIM), Laplacian L = diag(deg) - A.
    conn = (jax.random.uniform(k_a, (N, INPUT_DIM)) > 0.8).astype(jnp.float32)
    weights = jax.random.uniform(k_w, (N, INPUT_DIM), jnp.float32, 0.5, 1.5)
    A = conn * weights
    deg = jnp.sum(A, axis=1)
    L = jnp.diag(deg) - A
    mask_in = (A != 0.0)     # accepted by the torch signature but overwritten there; unused

    params = init_params(k_p, INPUT_DIM, HIDDEN_LAYERS)
    w_slab = jax.block_until_ready(pack_params(params, PAD))   # packed once, reused per call

    sdne_forward = build_sdne_forward(ALPHA, BETA)
    del mask_in  # torch forward recomputes mask = (A != 0); kernel does the same internally

    loss = sdne_forward(A, L, w_slab)
    loss = jax.block_until_ready(loss)

    ref = sdne_reference(A, L, params, ALPHA, BETA)
    assert jnp.allclose(loss, ref, rtol=1e-4, atol=1e-4), (loss, ref)

    print("KERNEL_OK")
</pallas_src>

<mosaic_0001>
module attributes {stable_mosaic.version = 11 : i64} {
  func.func @sdne_kernel(%arg0: memref<128x128xf32, #tpu.memory_space<vmem>>, %arg1: memref<128x128xf32, #tpu.memory_space<vmem>>, %arg2: memref<5x128x128xf32, #tpu.memory_space<vmem>>, %arg3: memref<1x1xf32, #tpu.memory_space<smem>>) attributes {dimension_semantics = [], scalar_prefetch = 0 : i64, scratch_operands = 0 : i64, tpu.core_type = #tpu.core_type<tc>} {
    %c0 = arith.constant 0 : index
    %c0_0 = arith.constant 0 : index
    %0 = vector.load %arg0[%c0, %c0_0] : memref<128x128xf32, #tpu.memory_space<vmem>>, vector<128x128xf32>
    %c0_1 = arith.constant 0 : index
    %c0_2 = arith.constant 0 : index
    %1 = vector.load %arg1[%c0_1, %c0_2] : memref<128x128xf32, #tpu.memory_space<vmem>>, vector<128x128xf32>
    %c4 = arith.constant 4 : index
    %c0_3 = arith.constant 0 : index
    %c0_4 = arith.constant 0 : index
    %2 = vector.load %arg2[%c4, %c0_3, %c0_4] : memref<5x128x128xf32, #tpu.memory_space<vmem>>, vector<1x128x128xf32>
    %3 = vector.shape_cast %2 : vector<1x128x128xf32> to vector<128x128xf32>
    %c0_5 = arith.constant 0 : index
    %c0_6 = arith.constant 0 : index
    %c0_7 = arith.constant 0 : index
    %4 = vector.load %arg2[%c0_5, %c0_6, %c0_7] : memref<5x128x128xf32, #tpu.memory_space<vmem>>, vector<1x128x128xf32>
    %5 = vector.shape_cast %4 : vector<1x128x128xf32> to vector<128x128xf32>
    %cst = arith.constant dense<0.000000e+00> : vector<128x128xf32>
    %6 = tpu.matmul %0, %5, %cst {dimension_numbers = #tpu.dot_dimension_numbers<[1], [0], [0], [1], [0, 0, 1, 1], [], []>} : vector<128x128xf32>, vector<128x128xf32>, vector<128x128xf32> -> vector<128x128xf32>
    %7 = vector.extract_strided_slice %3 {offsets = [0, 0], sizes = [1, 128], strides = [1, 1]} : vector<128x128xf32> to vector<1x128xf32>
    %8 = vector.broadcast %7 : vector<1x128xf32> to vector<128x128xf32>
    %9 = arith.addf %6, %8 : vector<128x128xf32>
    %cst_8 = arith.constant 0.000000e+00 : f32
    %10 = vector.broadcast %cst_8 : f32 to vector<128x128xf32>
    %11 = arith.maximumf %9, %10 : vector<128x128xf32>
    %c1 = arith.constant 1 : index
    %c0_9 = arith.constant 0 : index
    %c0_10 = arith.constant 0 : index
    %12 = vector.load %arg2[%c1, %c0_9, %c0_10] : memref<5x128x128xf32, #tpu.memory_space<vmem>>, vector<1x128x128xf32>
    %13 = vector.shape_cast %12 : vector<1x128x128xf32> to vector<128x128xf32>
    %cst_11 = arith.constant dense<0.000000e+00> : vector<128x128xf32>
    %14 = tpu.matmul %11, %13, %cst_11 {dimension_numbers = #tpu.dot_dimension_numbers<[1], [0], [0], [1], [0, 0, 1, 1], [], []>} : vector<128x128xf32>, vector<128x128xf32>, vector<128x128xf32> -> vector<128x128xf32>
    %15 = vector.extract_strided_slice %3 {offsets = [1, 0], sizes = [1, 128], strides = [1, 1]} : vector<128x128xf32> to vector<1x128xf32>
    %16 = vector.broadcast %15 : vector<1x128xf32> to vector<128x128xf32>
    %17 = arith.addf %14, %16 : vector<128x128xf32>
    %cst_12 = arith.constant 0.000000e+00 : f32
    %18 = vector.broadcast %cst_12 : f32 to vector<128x128xf32>
    %19 = arith.maximumf %17, %18 : vector<128x128xf32>
    %c2 = arith.constant 2 : index
    %c0_13 = arith.constant 0 : index
    %c0_14 = arith.constant 0 : index
    %20 = vector.load %arg2[%c2, %c0_13, %c0_14] : memref<5x128x128xf32, #tpu.memory_space<vmem>>, vector<1x128x128xf32>
    %21 = vector.shape_cast %20 : vector<1x128x128xf32> to vector<128x128xf32>
    %cst_15 = arith.constant dense<0.000000e+00> : vector<128x128xf32>
    %22 = tpu.matmul %19, %21, %cst_15 {dimension_numbers = #tpu.dot_dimension_numbers<[1], [0], [0], [1], [0, 0, 1, 1], [], []>} : vector<128x128xf32>, vector<128x128xf32>, vector<128x128xf32> -> vector<128x128xf32>
    %23 = vector.extract_strided_slice %3 {offsets = [2, 0], sizes = [1, 128], strides = [1, 1]} : vector<128x128xf32> to vector<1x128xf32>
    %24 = vector.broadcast %23 : vector<1x128xf32> to vector<128x128xf32>
    %25 = arith.addf %22, %24 : vector<128x128xf32>
    %cst_16 = arith.constant 0.000000e+00 : f32
    %26 = vector.broadcast %cst_16 : f32 to vector<128x128xf32>
    %27 = arith.maximumf %25, %26 : vector<128x128xf32>
    %c3 = arith.constant 3 : index
    %c0_17 = arith.constant 0 : index
    %c0_18 = arith.constant 0 : index
    %28 = vector.load %arg2[%c3, %c0_17, %c0_18] : memref<5x128x128xf32, #tpu.memory_space<vmem>>, vector<1x128x128xf32>
    %29 = vector.shape_cast %28 : vector<1x128x128xf32> to vector<128x128xf32>
    %cst_19 = arith.constant dense<0.000000e+00> : vector<128x128xf32>
    %30 = tpu.matmul %27, %29, %cst_19 {dimension_numbers = #tpu.dot_dimension_numbers<[1], [0], [0], [1], [0, 0, 1, 1], [], []>} : vector<128x128xf32>, vector<128x128xf32>, vector<128x128xf32> -> vector<128x128xf32>
    %31 = vector.extract_strided_slice %3 {offsets = [3, 0], sizes = [1, 128], strides = [1, 1]} : vector<128x128xf32> to vector<1x128xf32>
    %32 = vector.broadcast %31 : vector<1x128xf32> to vector<128x128xf32>
    %33 = arith.addf %30, %32 : vector<128x128xf32>
    %cst_20 = arith.constant 0.000000e+00 : f32
    %34 = vector.broadcast %cst_20 : f32 to vector<128x128xf32>
    %35 = arith.maximumf %33, %34 : vector<128x128xf32>
    %cst_21 = arith.constant 0.000000e+00 : f32
    %36 = vector.broadcast %cst_21 : f32 to vector<128x128xf32>
    %37 = arith.cmpf one, %0, %36 : vector<128x128xf32>
    %cst_22 = arith.constant 1.000000e+00 : f32
    %cst_23 = arith.constant 0.000000e+00 : f32
    %38 = vector.broadcast %cst_22 : f32 to vector<128x128xf32>
    %39 = vector.broadcast %cst_23 : f32 to vector<128x128xf32>
    %40 = arith.select %37, %38, %39 : vector<128x128xi1>, vector<128x128xf32>
    %41 = arith.subf %0, %35 : vector<128x128xf32>
    %42 = arith.mulf %41, %41 : vector<128x128xf32>
    %43 = arith.mulf %40, %42 : vector<128x128xf32>
    %cst_24 = arith.constant dense<0.000000e+00> : vector<128x128xf32>
    %44 = tpu.matmul %1, %19, %cst_24 {dimension_numbers = #tpu.dot_dimension_numbers<[1], [0], [0], [1], [0, 0, 1, 1], [], []>} : vector<128x128xf32>, vector<128x128xf32>, vector<128x128xf32> -> vector<128x128xf32>
    %45 = arith.mulf %19, %44 : vector<128x128xf32>
    %cst_25 = arith.constant dense<0.000000e+00> : vector<128xf32>
    %46 = vector.multi_reduction <add>, %40, %cst_25 [1] : vector<128x128xf32> to vector<128xf32>
    %47 = vector.shape_cast %46 : vector<128xf32> to vector<128x1xf32>
    %48 = vector.shape_cast %47 : vector<128x1xf32> to vector<1x128x1xf32>
    %cst_26 = arith.constant dense<0.000000e+00> : vector<1xf32>
    %49 = vector.multi_reduction <add>, %48, %cst_26 [1, 2] : vector<1x128x1xf32> to vector<1xf32>
    %50 = vector.shape_cast %49 : vector<1xf32> to vector<1x1x1xf32>
    %51 = vector.extract %50[0, 0, 0] : f32 from vector<1x1x1xf32>
    %cst_27 = arith.constant 1.000000e+00 : f32
    %52 = arith.maximumf %51, %cst_27 : f32
    %cst_28 = arith.constant 2.500000e+01 : f32
    %53 = arith.divf %cst_28, %52 : f32
    %54 = vector.broadcast %53 : f32 to vector<128x128xf32>
    %55 = arith.mulf %54, %43 : vector<128x128xf32>
    %cst_29 = arith.constant 2.000000e-02 : f32
    %56 = vector.broadcast %cst_29 : f32 to vector<128x128xf32>
    %57 = arith.mulf %56, %45 : vector<128x128xf32>
    %58 = arith.addf %55, %57 : vector<128x128xf32>
    %59 = vector.shape_cast %58 : vector<128x128xf32> to vector<1x128x128xf32>
    %cst_30 = arith.constant dense<0.000000e+00> : vector<1xf32>
    %60 = vector.multi_reduction <add>, %59, %cst_30 [1, 2] : vector<1x128x128xf32> to vector<1xf32>
    %61 = vector.shape_cast %60 : vector<1xf32> to vector<1x1x1xf32>
    %62 = vector.extract %61[0, 0, 0] : f32 from vector<1x1x1xf32>
    %c0_31 = arith.constant 0 : index
    %c0_32 = arith.constant 0 : index
    %63 = memref.load %arg3[%c0_31, %c0_32] : memref<1x1xf32, #tpu.memory_space<smem>>
    memref.store %62, %arg3[%c0_31, %c0_32] : memref<1x1xf32, #tpu.memory_space<smem>>
    return
  }
}

</mosaic_0001>

<llo_original>
// kernel: forward.1
$region0: #{forward.1}
  #allocation0 [shape = 'u32[]', space=smem, size = 0x4, offset = 0x4, fixed_abs, tag = 'smem constant byte address 0x4 - core index']
  #allocation1 [shape = 'u32[72,128]{1,0:T(1,128)}', space=vmem, size = 0x9000, scoped, tag = 'internal scratch']
  %s0 = inlined_call_operand.hbm [shape: f32[128,128], index: 0, kind: input, shape index: {}]
  %s1 = inlined_call_operand.hbm [shape: f32[128,128], index: 1, kind: input, shape index: {}]
  %s2 = inlined_call_operand.hbm [shape: f32[5,128,128], index: 2, kind: input, shape index: {}]
  %s3 = inlined_call_operand.hbm [shape: f32[1,1], index: 3, kind: output, shape index: {}]
  %s4 = sld [smem:[#allocation0]]
  $region34: #{forward.1} parent=0
    _
  %s6 = ssub.s32 1, %s4
  %s7 = scalar_select 0, %s6, %s4
  $region1: #{forward.1} parent=0
    #allocation2 [shape = 'u8[65536]{0}', space=vmem, size = 0x10000, scoped, tag = 'input window, operand 0, single buffered']
    #allocation3 [shape = 's32[1]{0}', space=sflag, size = 0x4, scoped, tag = 'scoped memory for forward.1']
    #allocation4 [shape = 's32[1]{0}', space=sflag, size = 0x4, scoped, tag = 'scoped memory for forward.1']
    #allocation5 [shape = 'u8[65536]{0}', space=vmem, size = 0x10000, scoped, tag = 'input window, operand 1, single buffered']
    #allocation6 [shape = 's32[1]{0}', space=sflag, size = 0x4, scoped, tag = 'scoped memory for forward.1']
    #allocation7 [shape = 'u8[327680]{0}', space=vmem, size = 0x50000, scoped, tag = 'input window, operand 2, single buffered']
    #allocation8 [shape = 'u8[512]{0}', space=smem, size = 0x200, scoped, tag = 'output window, operand 0, single buffered']
    %8 = vsyncpa [#allocation3], 0
    %9 = vsyncpa [#allocation6], 0
    %10 = vsyncpa [#allocation4], 0
    // Predicated region
    $region2: #{forward.1} parent=1 // pred_check
      _
    $region3: #{forward.1} parent=1 // pred_check_branch
      %12 = sbr.rel (0) target = $region5
    $region4: #{forward.1} parent=1 // pred_region
      %14 = vsyncadd [#allocation3], 0
      %s15 = sshll.u32 %s0, 4
      %s16 = int_to_ptr.hbm [resolvable:$true] %s15
      %s17 = sshll.u32 [#allocation2], 4
      %s18 = int_to_ptr.vmem [resolvable:$true] %s17
      %23 = dma.hbm_to_vmem [thread:$0]  %s16, 2048, %s18, [#allocation3], 128, 128, 8
    $region5: #{forward.1} parent=1 // pred_fallthru
      _
    // Predicated region
    $region6: #{forward.1} parent=1 // pred_check
      _
    $region7: #{forward.1} parent=1 // pred_check_branch
      %25 = sbr.rel (0) target = $region9
    $region8: #{forward.1} parent=1 // pred_region
      %27 = vsyncadd [#allocation6], 0
      %s28 = sshll.u32 %s1, 4
      %s29 = int_to_ptr.hbm [resolvable:$true] %s28
      %s30 = sshll.u32 [#allocation5], 4
      %s31 = int_to_ptr.vmem [resolvable:$true] %s30
      %36 = dma.hbm_to_vmem [thread:$0]  %s29, 2048, %s31, [#allocation6], 128, 128, 8
    $region9: #{forward.1} parent=1 // pred_fallthru
      _
    // Predicated region
    $region10: #{forward.1} parent=1 // pred_check
      _
    $region11: #{forward.1} parent=1 // pred_check_branch
      %38 = sbr.rel (0) target = $region13
    $region12: #{forward.1} parent=1 // pred_region
      %40 = vsyncadd [#allocation6], 0
      %s41 = sshll.u32 %s2, 4
      %s42 = int_to_ptr.hbm [resolvable:$true] %s41
      %s43 = sshll.u32 [#allocation7], 4
      %s44 = int_to_ptr.vmem [resolvable:$true] %s43
      %49 = dma.hbm_to_vmem [thread:$0]  %s42, 10240, %s44, [#allocation6], 128, 128, 8
    $region13: #{forward.1} parent=1 // pred_fallthru
      _
    // Predicated region
    $region14: #{forward.1} parent=1 // pred_check
      _
    $region15: #{forward.1} parent=1 // pred_check_branch
      %51 = sbr.rel (0) target = $region17
    $region16: #{forward.1} parent=1 // pred_region
      %53 = dma.done [#allocation3], 2048
    $region17: #{forward.1} parent=1 // pred_fallthru
      _
    // Predicated region
    $region18: #{forward.1} parent=1 // pred_check
      _
    $region19: #{forward.1} parent=1 // pred_check_branch
      %55 = sbr.rel (0) target = $region21
    $region20: #{forward.1} parent=1 // pred_region
      %57 = dma.done [#allocation6], 2048
    $region21: #{forward.1} parent=1 // pred_fallthru
      _
    // Predicated region
    $region22: #{forward.1} parent=1 // pred_check
      _
    $region23: #{forward.1} parent=1 // pred_check_branch
      %59 = sbr.rel (0) target = $region25
    $region24: #{forward.1} parent=1 // pred_region
      %61 = dma.done [#allocation6], 10240
    $region25: #{forward.1} parent=1 // pred_fallthru
      _
    %v62 = vld [vmem:[#allocation2] sm:$0xff]
    %v63 = vld [vmem:[#allocation2 + $0x8] sm:$0xff]
    %v64 = vld [vmem:[#allocation2 + $0x10] sm:$0xff]
    %v65 = vld [vmem:[#allocation2 + $0x18] sm:$0xff]
    %v66 = vld [vmem:[#allocation2 + $0x20] sm:$0xff]
    %v67 = vld [vmem:[#allocation2 + $0x28] sm:$0xff]
    %v68 = vld [vmem:[#allocation2 + $0x30] sm:$0xff]
    %v69 = vld [vmem:[#allocation2 + $0x38] sm:$0xff]
    %v70 = vld [vmem:[#allocation2 + $0x40] sm:$0xff]
    %v71 = vld [vmem:[#allocation2 + $0x48] sm:$0xff]
    %v72 = vld [vmem:[#allocation2 + $0x50] sm:$0xff]
    %v73 = vld [vmem:[#allocation2 + $0x58] sm:$0xff]
    %v74 = vld [vmem:[#allocation2 + $0x60] sm:$0xff]
    %v75 = vld [vmem:[#allocation2 + $0x68] sm:$0xff]
    %v76 = vld [vmem:[#allocation2 + $0x70] sm:$0xff]
    %v77 = vld [vmem:[#allocation2 + $0x78] sm:$0xff]
    %v78 = vld [vmem:[#allocation5] sm:$0xff]
    %v79 = vld [vmem:[#allocation5 + $0x8] sm:$0xff]
    %v80 = vld [vmem:[#allocation5 + $0x10] sm:$0xff]
    %v81 = vld [vmem:[#allocation5 + $0x18] sm:$0xff]
    %v82 = vld [vmem:[#allocation5 + $0x20] sm:$0xff]
    %v83 = vld [vmem:[#allocation5 + $0x28] sm:$0xff]
    %v84 = vld [vmem:[#allocation5 + $0x30] sm:$0xff]
    %v85 = vld [vmem:[#allocation5 + $0x38] sm:$0xff]
    %v86 = vld [vmem:[#allocation5 + $0x40] sm:$0xff]
    %v87 = vld [vmem:[#allocation5 + $0x48] sm:$0xff]
    %v88 = vld [vmem:[#allocation5 + $0x50] sm:$0xff]
    %v89 = vld [vmem:[#allocation5 + $0x58] sm:$0xff]
    %v90 = vld [vmem:[#allocation5 + $0x60] sm:$0xff]
    %v91 = vld [vmem:[#allocation5 + $0x68] sm:$0xff]
    %v92 = vld [vmem:[#allocation5 + $0x70] sm:$0xff]
    %v93 = vld [vmem:[#allocation5 + $0x78] sm:$0xff]
    %s94 = scalar_lea.vmem [#allocation7], 512
    %v95 = vld [vmem:[%s94] sm:$0xff]
    %v96 = vld [vmem:[#allocation7] sm:$0xff]
    %v97 = vld [vmem:[#allocation7 + $0x8] sm:$0xff]
    %v98 = vld [vmem:[#allocation7 + $0x10] sm:$0xff]
    %v99 = vld [vmem:[#allocation7 + $0x18] sm:$0xff]
    %v100 = vld [vmem:[#allocation7 + $0x20] sm:$0xff]
    %v101 = vld [vmem:[#allocation7 + $0x28] sm:$0xff]
    %v102 = vld [vmem:[#allocation7 + $0x30] sm:$0xff]
    %v103 = vld [vmem:[#allocation7 + $0x38] sm:$0xff]
    %v104 = vld [vmem:[#allocation7 + $0x40] sm:$0xff]
    %v105 = vld [vmem:[#allocation7 + $0x48] sm:$0xff]
    %v106 = vld [vmem:[#allocation7 + $0x50] sm:$0xff]
    %v107 = vld [vmem:[#allocation7 + $0x58] sm:$0xff]
    %v108 = vld [vmem:[#allocation7 + $0x60] sm:$0xff]
    %v109 = vld [vmem:[#allocation7 + $0x68] sm:$0xff]
    %v110 = vld [vmem:[#allocation7 + $0x70] sm:$0xff]
    %v111 = vld [vmem:[#allocation7 + $0x78] sm:$0xff]
    %v112 = vperm.slane %v95, 0
    %113 = vmatpush.msra.mxu0 %v111
    %114 = vmatpush.msra.mxu0 %v110
    %115 = vmatpush.msra.mxu0 %v109
    %116 = vmatpush.msra.mxu0 %v108
    %117 = vmatpush.msra.mxu0 %v107
    %118 = vmatpush.msra.mxu0 %v106
    %119 = vmatpush.msra.mxu0 %v105
    %120 = vmatpush.msra.mxu0 %v104
    %121 = vmatpush.msra.mxu0 %v103
    %122 = vmatpush.msra.mxu0 %v102
    %123 = vmatpush.msra.mxu0 %v101
    %124 = vmatpush.msra.mxu0 %v100
    %125 = vmatpush.msra.mxu0 %v99
    %126 = vmatpush.msra.mxu0 %v98
    %127 = vmatpush.msra.mxu0 %v97
    %128 = vmatpush.msra.mxu0 %v96
    %129 = vmatmul.f32.gmra.mxu0 %v62
    %v130 = vpop.f32.mrf.mxu0
    %v131 = vadd.f32 %v112, %v130
    %132 = vmatmul.f32.gmra.mxu0 %v63
    %v133 = vpop.f32.mrf.mxu0
    %v134 = vadd.f32 %v112, %v133
    %135 = vmatmul.f32.gmra.mxu0 %v64
    %v136 = vpop.f32.mrf.mxu0
    %v137 = vadd.f32 %v112, %v136
    %138 = vmatmul.f32.gmra.mxu0 %v65
    %v139 = vpop.f32.mrf.mxu0
    %v140 = vadd.f32 %v112, %v139
    %141 = vmatmul.f32.gmra.mxu0 %v66
    %v142 = vpop.f32.mrf.mxu0
    %v143 = vadd.f32 %v112, %v142
    %144 = vmatmul.f32.gmra.mxu0 %v67
    %v145 = vpop.f32.mrf.mxu0
    %v146 = vadd.f32 %v112, %v145
    %147 = vmatmul.f32.gmra.mxu0 %v68
    %v148 = vpop.f32.mrf.mxu0
    %v149 = vadd.f32 %v112, %v148
    %150 = vmatmul.f32.gmra.mxu0 %v69
    %v151 = vpop.f32.mrf.mxu0
    %v152 = vadd.f32 %v112, %v151
    %153 = vmatmul.f32.gmra.mxu0 %v70
    %v154 = vpop.f32.mrf.mxu0
    %v155 = vadd.f32 %v112, %v154
    %156 = vmatmul.f32.gmra.mxu0 %v71
    %v157 = vpop.f32.mrf.mxu0
    %v158 = vadd.f32 %v112, %v157
    %159 = vmatmul.f32.gmra.mxu0 %v72
    %v160 = vpop.f32.mrf.mxu0
    %v161 = vadd.f32 %v112, %v160
    %162 = vmatmul.f32.gmra.mxu0 %v73
    %v163 = vpop.f32.mrf.mxu0
    %v164 = vadd.f32 %v112, %v163
    %165 = vmatmul.f32.gmra.mxu0 %v74
    %v166 = vpop.f32.mrf.mxu0
    %v167 = vadd.f32 %v112, %v166
    %168 = vmatmul.f32.gmra.mxu0 %v75
    %v169 = vpop.f32.mrf.mxu0
    %v170 = vadd.f32 %v112, %v169
    %171 = vmatmul.f32.gmra.mxu0 %v76
    %v172 = vpop.f32.mrf.mxu0
    %v173 = vadd.f32 %v112, %v172
    %174 = vmatmul.f32.gmra.mxu0 %v77
    %v175 = vpop.f32.mrf.mxu0
    %v176 = vadd.f32 %v112, %v175
    %177 = vdwg.mxu0
    %v178 = vmax.f32 %v131, 0.0
    %v179 = vmax.f32 %v134, 0.0
    %v180 = vmax.f32 %v137, 0.0
    %v181 = vmax.f32 %v140, 0.0
    %v182 = vmax.f32 %v143, 0.0
    %v183 = vmax.f32 %v146, 0.0
    %v184 = vmax.f32 %v149, 0.0
    %v185 = vmax.f32 %v152, 0.0
    %v186 = vmax.f32 %v155, 0.0
    %v187 = vmax.f32 %v158, 0.0
    %v188 = vmax.f32 %v161, 0.0
    %v189 = vmax.f32 %v164, 0.0
    %v190 = vmax.f32 %v167, 0.0
    %v191 = vmax.f32 %v170, 0.0
    %v192 = vmax.f32 %v173, 0.0
    %v193 = vmax.f32 %v176, 0.0
    %s194 = scalar_lea.vmem [#allocation7], 128
    %v195 = vld [vmem:[%s194] sm:$0xff]
    %v196 = vld [vmem:[%s194 + $0x8] sm:$0xff]
    %v197 = vld [vmem:[%s194 + $0x10] sm:$0xff]
    %v198 = vld [vmem:[%s194 + $0x18] sm:$0xff]
    %v199 = vld [vmem:[%s194 + $0x20] sm:$0xff]
    %v200 = vld [vmem:[%s194 + $0x28] sm:$0xff]
    %v201 = vld [vmem:[%s194 + $0x30] sm:$0xff]
    %v202 = vld [vmem:[%s194 + $0x38] sm:$0xff]
    %v203 = vld [vmem:[%s194 + $0x40] sm:$0xff]
    %v204 = vld [vmem:[%s194 + $0x48] sm:$0xff]
    %v205 = vld [vmem:[%s194 + $0x50] sm:$0xff]
    %v206 = vld [vmem:[%s194 + $0x58] sm:$0xff]
    %v207 = vld [vmem:[%s194 + $0x60] sm:$0xff]
    %v208 = vld [vmem:[%s194 + $0x68] sm:$0xff]
    %v209 = vld [vmem:[%s194 + $0x70] sm:$0xff]
    %v210 = vld [vmem:[%s194 + $0x78] sm:$0xff]
    %v211 = vperm.slane %v95, 1
    %212 = vmatpush.msra.mxu0 %v210
    %213 = vmatpush.msra.mxu0 %v209
    %214 = vmatpush.msra.mxu0 %v208
    %215 = vmatpush.msra.mxu0 %v207
    %216 = vmatpush.msra.mxu0 %v206
    %217 = vmatpush.msra.mxu0 %v205
    %218 = vmatpush.msra.mxu0 %v204
    %219 = vmatpush.msra.mxu0 %v203
    %220 = vmatpush.msra.mxu0 %v202
    %221 = vmatpush.msra.mxu0 %v201
    %222 = vmatpush.msra.mxu0 %v200
    %223 = vmatpush.msra.mxu0 %v199
    %224 = vmatpush.msra.mxu0 %v198
    %225 = vmatpush.msra.mxu0 %v197
    %226 = vmatpush.msra.mxu0 %v196
    %227 = vmatpush.msra.mxu0 %v195
    %228 = vmatmul.f32.gmra.mxu0 %v178
    %v229 = vpop.f32.mrf.mxu0
    %v230 = vadd.f32 %v211, %v229
    %231 = vmatmul.f32.gmra.mxu0 %v179
    %v232 = vpop.f32.mrf.mxu0
    %v233 = vadd.f32 %v211, %v232
    %234 = vmatmul.f32.gmra.mxu0 %v180
    %v235 = vpop.f32.mrf.mxu0
    %v236 = vadd.f32 %v211, %v235
    %237 = vmatmul.f32.gmra.mxu0 %v181
    %v238 = vpop.f32.mrf.mxu0
    %v239 = vadd.f32 %v211, %v238
    %240 = vmatmul.f32.gmra.mxu0 %v182
    %v241 = vpop.f32.mrf.mxu0
    %v242 = vadd.f32 %v211, %v241
    %243 = vmatmul.f32.gmra.mxu0 %v183
    %v244 = vpop.f32.mrf.mxu0
    %v245 = vadd.f32 %v211, %v244
    %246 = vmatmul.f32.gmra.mxu0 %v184
    %v247 = vpop.f32.mrf.mxu0
    %v248 = vadd.f32 %v211, %v247
    %249 = vmatmul.f32.gmra.mxu0 %v185
    %v250 = vpop.f32.mrf.mxu0
    %v251 = vadd.f32 %v211, %v250
    %252 = vmatmul.f32.gmra.mxu0 %v186
    %v253 = vpop.f32.mrf.mxu0
    %v254 = vadd.f32 %v211, %v253
    %255 = vmatmul.f32.gmra.mxu0 %v187
    %v256 = vpop.f32.mrf.mxu0
    %v257 = vadd.f32 %v211, %v256
    %258 = vmatmul.f32.gmra.mxu0 %v188
    %v259 = vpop.f32.mrf.mxu0
    %v260 = vadd.f32 %v211, %v259
    %261 = vmatmul.f32.gmra.mxu0 %v189
    %v262 = vpop.f32.mrf.mxu0
    %v263 = vadd.f32 %v211, %v262
    %264 = vmatmul.f32.gmra.mxu0 %v190
    %v265 = vpop.f32.mrf.mxu0
    %v266 = vadd.f32 %v211, %v265
    %267 = vmatmul.f32.gmra.mxu0 %v191
    %v268 = vpop.f32.mrf.mxu0
    %v269 = vadd.f32 %v211, %v268
    %270 = vmatmul.f32.gmra.mxu0 %v192
    %v271 = vpop.f32.mrf.mxu0
    %v272 = vadd.f32 %v211, %v271
    %273 = vmatmul.f32.gmra.mxu0 %v193
    %v274 = vpop.f32.mrf.mxu0
    %v275 = vadd.f32 %v211, %v274
    %276 = vdwg.mxu0
    %v277 = vmax.f32 %v230, 0.0
    %v278 = vmax.f32 %v233, 0.0
    %v279 = vmax.f32 %v236, 0.0
    %v280 = vmax.f32 %v239, 0.0
    %v281 = vmax.f32 %v242, 0.0
    %v282 = vmax.f32 %v245, 0.0
    %v283 = vmax.f32 %v248, 0.0
    %v284 = vmax.f32 %v251, 0.0
    %v285 = vmax.f32 %v254, 0.0
    %v286 = vmax.f32 %v257, 0.0
    %v287 = vmax.f32 %v260, 0.0
    %v288 = vmax.f32 %v263, 0.0
    %v289 = vmax.f32 %v266, 0.0
    %v290 = vmax.f32 %v269, 0.0
    %v291 = vmax.f32 %v272, 0.0
    %v292 = vmax.f32 %v275, 0.0
    %s293 = scalar_lea.vmem [#allocation7], 256
    %v294 = vld [vmem:[%s293] sm:$0xff]
    %v295 = vld [vmem:[%s293 + $0x8] sm:$0xff]
    %v296 = vld [vmem:[%s293 + $0x10] sm:$0xff]
    %v297 = vld [vmem:[%s293 + $0x18] sm:$0xff]
    %v298 = vld [vmem:[%s293 + $0x20] sm:$0xff]
    %v299 = vld [vmem:[%s293 + $0x28] sm:$0xff]
    %v300 = vld [vmem:[%s293 + $0x30] sm:$0xff]
    %v301 = vld [vmem:[%s293 + $0x38] sm:$0xff]
    %v302 = vld [vmem:[%s293 + $0x40] sm:$0xff]
    %v303 = vld [vmem:[%s293 + $0x48] sm:$0xff]
    %v304 = vld [vmem:[%s293 + $0x50] sm:$0xff]
    %v305 = vld [vmem:[%s293 + $0x58] sm:$0xff]
    %v306 = vld [vmem:[%s293 + $0x60] sm:$0xff]
    %v307 = vld [vmem:[%s293 + $0x68] sm:$0xff]
    %v308 = vld [vmem:[%s293 + $0x70] sm:$0xff]
    %v309 = vld [vmem:[%s293 + $0x78] sm:$0xff]
    %v310 = vperm.slane %v95, 2
    %311 = vmatpush.msra.mxu0 %v309
    %312 = vmatpush.msra.mxu0 %v308
    %313 = vmatpush.msra.mxu0 %v307
    %314 = vmatpush.msra.mxu0 %v306
    %315 = vmatpush.msra.mxu0 %v305
    %316 = vmatpush.msra.mxu0 %v304
    %317 = vmatpush.msra.mxu0 %v303
    %318 = vmatpush.msra.mxu0 %v302
    %319 = vmatpush.msra.mxu0 %v301
    %320 = vmatpush.msra.mxu0 %v300
    %321 = vmatpush.msra.mxu0 %v299
    %322 = vmatpush.msra.mxu0 %v298
    %323 = vmatpush.msra.mxu0 %v297
    %324 = vmatpush.msra.mxu0 %v296
    %325 = vmatpush.msra.mxu0 %v295
    %326 = vmatpush.msra.mxu0 %v294
    %327 = vmatmul.f32.gmra.mxu0 %v277
    %v328 = vpop.f32.mrf.mxu0
    %v329 = vadd.f32 %v310, %v328
    %330 = vmatmul.f32.gmra.mxu0 %v278
    %v331 = vpop.f32.mrf.mxu0
    %v332 = vadd.f32 %v310, %v331
    %333 = vmatmul.f32.gmra.mxu0 %v279
    %v334 = vpop.f32.mrf.mxu0
    %v335 = vadd.f32 %v310, %v334
    %336 = vmatmul.f32.gmra.mxu0 %v280
    %v337 = vpop.f32.mrf.mxu0
    %v338 = vadd.f32 %v310, %v337
    %339 = vmatmul.f32.gmra.mxu0 %v281
    %v340 = vpop.f32.mrf.mxu0
    %v341 = vadd.f32 %v310, %v340
    %342 = vmatmul.f32.gmra.mxu0 %v282
    %v343 = vpop.f32.mrf.mxu0
    %v344 = vadd.f32 %v310, %v343
    %345 = vmatmul.f32.gmra.mxu0 %v283
    %v346 = vpop.f32.mrf.mxu0
    %v347 = vadd.f32 %v310, %v346
    %348 = vmatmul.f32.gmra.mxu0 %v284
    %v349 = vpop.f32.mrf.mxu0
    %v350 = vadd.f32 %v310, %v349
    %351 = vmatmul.f32.gmra.mxu0 %v285
    %v352 = vpop.f32.mrf.mxu0
    %v353 = vadd.f32 %v310, %v352
    %354 = vmatmul.f32.gmra.mxu0 %v286
    %v355 = vpop.f32.mrf.mxu0
    %v356 = vadd.f32 %v310, %v355
    %357 = vmatmul.f32.gmra.mxu0 %v287
    %v358 = vpop.f32.mrf.mxu0
    %v359 = vadd.f32 %v310, %v358
    %360 = vmatmul.f32.gmra.mxu0 %v288
    %v361 = vpop.f32.mrf.mxu0
    %v362 = vadd.f32 %v310, %v361
    %363 = vmatmul.f32.gmra.mxu0 %v289
    %v364 = vpop.f32.mrf.mxu0
    %v365 = vadd.f32 %v310, %v364
    %366 = vmatmul.f32.gmra.mxu0 %v290
    %v367 = vpop.f32.mrf.mxu0
    %v368 = vadd.f32 %v310, %v367
    %369 = vmatmul.f32.gmra.mxu0 %v291
    %v370 = vpop.f32.mrf.mxu0
    %v371 = vadd.f32 %v310, %v370
    %372 = vmatmul.f32.gmra.mxu0 %v292
    %v373 = vpop.f32.mrf.mxu0
    %v374 = vadd.f32 %v310, %v373
    %375 = vdwg.mxu0
    %v376 = vmax.f32 %v329, 0.0
    %v377 = vmax.f32 %v332, 0.0
    %v378 = vmax.f32 %v335, 0.0
    %v379 = vmax.f32 %v338, 0.0
    %v380 = vmax.f32 %v341, 0.0
    %v381 = vmax.f32 %v344, 0.0
    %v382 = vmax.f32 %v347, 0.0
    %v383 = vmax.f32 %v350, 0.0
    %v384 = vmax.f32 %v353, 0.0
    %v385 = vmax.f32 %v356, 0.0
    %v386 = vmax.f32 %v359, 0.0
    %v387 = vmax.f32 %v362, 0.0
    %v388 = vmax.f32 %v365, 0.0
    %v389 = vmax.f32 %v368, 0.0
    %v390 = vmax.f32 %v371, 0.0
    %v391 = vmax.f32 %v374, 0.0
    %s392 = scalar_lea.vmem [#allocation7], 384
    %v393 = vld [vmem:[%s392] sm:$0xff]
    %v394 = vld [vmem:[%s392 + $0x8] sm:$0xff]
    %v395 = vld [vmem:[%s392 + $0x10] sm:$0xff]
    %v396 = vld [vmem:[%s392 + $0x18] sm:$0xff]
    %v397 = vld [vmem:[%s392 + $0x20] sm:$0xff]
    %v398 = vld [vmem:[%s392 + $0x28] sm:$0xff]
    %v399 = vld [vmem:[%s392 + $0x30] sm:$0xff]
    %v400 = vld [vmem:[%s392 + $0x38] sm:$0xff]
    %v401 = vld [vmem:[%s392 + $0x40] sm:$0xff]
    %v402 = vld [vmem:[%s392 + $0x48] sm:$0xff]
    %v403 = vld [vmem:[%s392 + $0x50] sm:$0xff]
    %v404 = vld [vmem:[%s392 + $0x58] sm:$0xff]
    %v405 = vld [vmem:[%s392 + $0x60] sm:$0xff]
    %v406 = vld [vmem:[%s392 + $0x68] sm:$0xff]
    %v407 = vld [vmem:[%s392 + $0x70] sm:$0xff]
    %v408 = vld [vmem:[%s392 + $0x78] sm:$0xff]
    %v409 = vperm.slane %v95, 3
    %410 = vmatpush.msra.mxu0 %v408
    %411 = vmatpush.msra.mxu0 %v407
    %412 = vmatpush.msra.mxu0 %v406
    %413 = vmatpush.msra.mxu0 %v405
    %414 = vmatpush.msra.mxu0 %v404
    %415 = vmatpush.msra.mxu0 %v403
    %416 = vmatpush.msra.mxu0 %v402
    %417 = vmatpush.msra.mxu0 %v401
    %418 = vmatpush.msra.mxu0 %v400
    %419 = vmatpush.msra.mxu0 %v399
    %420 = vmatpush.msra.mxu0 %v398
    %421 = vmatpush.msra.mxu0 %v397
    %422 = vmatpush.msra.mxu0 %v396
    %423 = vmatpush.msra.mxu0 %v395
    %424 = vmatpush.msra.mxu0 %v394
    %425 = vmatpush.msra.mxu0 %v393
    %426 = vmatmul.f32.gmra.mxu0 %v376
    %v427 = vpop.f32.mrf.mxu0
    %v428 = vadd.f32 %v409, %v427
    %429 = vmatmul.f32.gmra.mxu0 %v377
    %v430 = vpop.f32.mrf.mxu0
    %v431 = vadd.f32 %v409, %v430
    %432 = vmatmul.f32.gmra.mxu0 %v378
    %v433 = vpop.f32.mrf.mxu0
    %v434 = vadd.f32 %v409, %v433
    %435 = vmatmul.f32.gmra.mxu0 %v379
    %v436 = vpop.f32.mrf.mxu0
    %v437 = vadd.f32 %v409, %v436
    %438 = vmatmul.f32.gmra.mxu0 %v380
    %v439 = vpop.f32.mrf.mxu0
    %v440 = vadd.f32 %v409, %v439
    %441 = vmatmul.f32.gmra.mxu0 %v381
    %v442 = vpop.f32.mrf.mxu0
    %v443 = vadd.f32 %v409, %v442
    %444 = vmatmul.f32.gmra.mxu0 %v382
    %v445 = vpop.f32.mrf.mxu0
    %v446 = vadd.f32 %v409, %v445
    %447 = vmatmul.f32.gmra.mxu0 %v383
    %v448 = vpop.f32.mrf.mxu0
    %v449 = vadd.f32 %v409, %v448
    %450 = vmatmul.f32.gmra.mxu0 %v384
    %v451 = vpop.f32.mrf.mxu0
    %v452 = vadd.f32 %v409, %v451
    %453 = vmatmul.f32.gmra.mxu0 %v385
    %v454 = vpop.f32.mrf.mxu0
    %v455 = vadd.f32 %v409, %v454
    %456 = vmatmul.f32.gmra.mxu0 %v386
    %v457 = vpop.f32.mrf.mxu0
    %v458 = vadd.f32 %v409, %v457
    %459 = vmatmul.f32.gmra.mxu0 %v387
    %v460 = vpop.f32.mrf.mxu0
    %v461 = vadd.f32 %v409, %v460
    %462 = vmatmul.f32.gmra.mxu0 %v388
    %v463 = vpop.f32.mrf.mxu0
    %v464 = vadd.f32 %v409, %v463
    %465 = vmatmul.f32.gmra.mxu0 %v389
    %v466 = vpop.f32.mrf.mxu0
    %v467 = vadd.f32 %v409, %v466
    %468 = vmatmul.f32.gmra.mxu0 %v390
    %v469 = vpop.f32.mrf.mxu0
    %v470 = vadd.f32 %v409, %v469
    %471 = vmatmul.f32.gmra.mxu0 %v391
    %v472 = vpop.f32.mrf.mxu0
    %v473 = vadd.f32 %v409, %v472
    %474 = vdwg.mxu0
    %v475 = vmax.f32 %v428, 0.0
    %v476 = vmax.f32 %v431, 0.0
    %v477 = vmax.f32 %v434, 0.0
    %v478 = vmax.f32 %v437, 0.0
    %v479 = vmax.f32 %v440, 0.0
    %v480 = vmax.f32 %v443, 0.0
    %v481 = vmax.f32 %v446, 0.0
    %v482 = vmax.f32 %v449, 0.0
    %v483 = vmax.f32 %v452, 0.0
    %v484 = vmax.f32 %v455, 0.0
    %v485 = vmax.f32 %v458, 0.0
    %v486 = vmax.f32 %v461, 0.0
    %v487 = vmax.f32 %v464, 0.0
    %v488 = vmax.f32 %v467, 0.0
    %v489 = vmax.f32 %v470, 0.0
    %v490 = vmax.f32 %v473, 0.0
    %vm491 = vcmp.ne.f32.partialorder %v62, 0.0
    %vm492 = vcmp.ne.f32.partialorder %v63, 0.0
    %vm493 = vcmp.ne.f32.partialorder %v64, 0.0
    %vm494 = vcmp.ne.f32.partialorder %v65, 0.0
    %vm495 = vcmp.ne.f32.partialorder %v66, 0.0
    %vm496 = vcmp.ne.f32.partialorder %v67, 0.0
    %vm497 = vcmp.ne.f32.partialorder %v68, 0.0
    %vm498 = vcmp.ne.f32.partialorder %v69, 0.0
    %vm499 = vcmp.ne.f32.partialorder %v70, 0.0
    %vm500 = vcmp.ne.f32.partialorder %v71, 0.0
    %vm501 = vcmp.ne.f32.partialorder %v72, 0.0
    %vm502 = vcmp.ne.f32.partialorder %v73, 0.0
    %vm503 = vcmp.ne.f32.partialorder %v74, 0.0
    %vm504 = vcmp.ne.f32.partialorder %v75, 0.0
    %vm505 = vcmp.ne.f32.partialorder %v76, 0.0
    %vm506 = vcmp.ne.f32.partialorder %v77, 0.0
    %v507 = vsel %vm491, 1.0, 0.0
    %v508 = vsel %vm492, 1.0, 0.0
    %v509 = vsel %vm493, 1.0, 0.0
    %v510 = vsel %vm494, 1.0, 0.0
    %v511 = vsel %vm495, 1.0, 0.0
    %v512 = vsel %vm496, 1.0, 0.0
    %v513 = vsel %vm497, 1.0, 0.0
    %v514 = vsel %vm498, 1.0, 0.0
    %v515 = vsel %vm499, 1.0, 0.0
    %v516 = vsel %vm500, 1.0, 0.0
    %v517 = vsel %vm501, 1.0, 0.0
    %v518 = vsel %vm502, 1.0, 0.0
    %v519 = vsel %vm503, 1.0, 0.0
    %v520 = vsel %vm504, 1.0, 0.0
    %v521 = vsel %vm505, 1.0, 0.0
    %v522 = vsel %vm506, 1.0, 0.0
    %v523 = vsub.f32 %v62, %v475
    %v524 = vsub.f32 %v63, %v476
    %v525 = vsub.f32 %v64, %v477
    %v526 = vsub.f32 %v65, %v478
    %v527 = vsub.f32 %v66, %v479
    %v528 = vsub.f32 %v67, %v480
    %v529 = vsub.f32 %v68, %v481
    %v530 = vsub.f32 %v69, %v482
    %v531 = vsub.f32 %v70, %v483
    %v532 = vsub.f32 %v71, %v484
    %v533 = vsub.f32 %v72, %v485
    %v534 = vsub.f32 %v73, %v486
    %v535 = vsub.f32 %v74, %v487
    %v536 = vsub.f32 %v75, %v488
    %v537 = vsub.f32 %v76, %v489
    %v538 = vsub.f32 %v77, %v490
    %v539 = vmul.f32 %v523, %v523
    %v540 = vmul.f32 %v524, %v524
    %v541 = vmul.f32 %v525, %v525
    %v542 = vmul.f32 %v526, %v526
    %v543 = vmul.f32 %v527, %v527
    %v544 = vmul.f32 %v528, %v528
    %v545 = vmul.f32 %v529, %v529
    %v546 = vmul.f32 %v530, %v530
    %v547 = vmul.f32 %v531, %v531
    %v548 = vmul.f32 %v532, %v532
    %v549 = vmul.f32 %v533, %v533
    %v550 = vmul.f32 %v534, %v534
    %v551 = vmul.f32 %v535, %v535
    %v552 = vmul.f32 %v536, %v536
    %v553 = vmul.f32 %v537, %v537
    %v554 = vmul.f32 %v538, %v538
    %v555 = vmul.f32 %v507, %v539
    %v556 = vmul.f32 %v508, %v540
    %v557 = vmul.f32 %v509, %v541
    %v558 = vmul.f32 %v510, %v542
    %v559 = vmul.f32 %v511, %v543
    %v560 = vmul.f32 %v512, %v544
    %v561 = vmul.f32 %v513, %v545
    %v562 = vmul.f32 %v514, %v546
    %v563 = vmul.f32 %v515, %v547
    %v564 = vmul.f32 %v516, %v548
    %v565 = vmul.f32 %v517, %v549
    %v566 = vmul.f32 %v518, %v550
    %v567 = vmul.f32 %v519, %v551
    %v568 = vmul.f32 %v520, %v552
    %v569 = vmul.f32 %v521, %v553
    %v570 = vmul.f32 %v522, %v554
    %571 = vmatpush.msra.mxu0 %v292
    %572 = vmatpush.msra.mxu0 %v291
    %573 = vmatpush.msra.mxu0 %v290
    %574 = vmatpush.msra.mxu0 %v289
    %575 = vmatpush.msra.mxu0 %v288
    %576 = vmatpush.msra.mxu0 %v287
    %577 = vmatpush.msra.mxu0 %v286
    %578 = vmatpush.msra.mxu0 %v285
    %579 = vmatpush.msra.mxu0 %v284
    %580 = vmatpush.msra.mxu0 %v283
    %581 = vmatpush.msra.mxu0 %v282
    %582 = vmatpush.msra.mxu0 %v281
    %583 = vmatpush.msra.mxu0 %v280
    %584 = vmatpush.msra.mxu0 %v279
    %585 = vmatpush.msra.mxu0 %v278
    %586 = vmatpush.msra.mxu0 %v277
    %587 = vmatmul.f32.gmra.mxu0 %v78
    %v588 = vpop.f32.mrf.mxu0
    %v589 = vadd.f32 0.0, %v588
    %590 = vmatmul.f32.gmra.mxu0 %v79
    %v591 = vpop.f32.mrf.mxu0
    %v592 = vadd.f32 0.0, %v591
    %593 = vmatmul.f32.gmra.mxu0 %v80
    %v594 = vpop.f32.mrf.mxu0
    %v595 = vadd.f32 0.0, %v594
    %596 = vmatmul.f32.gmra.mxu0 %v81
    %v597 = vpop.f32.mrf.mxu0
    %v598 = vadd.f32 0.0, %v597
    %599 = vmatmul.f32.gmra.mxu0 %v82
    %v600 = vpop.f32.mrf.mxu0
    %v601 = vadd.f32 0.0, %v600
    %602 = vmatmul.f32.gmra.mxu0 %v83
    %v603 = vpop.f32.mrf.mxu0
    %v604 = vadd.f32 0.0, %v603
    %605 = vmatmul.f32.gmra.mxu0 %v84
    %v606 = vpop.f32.mrf.mxu0
    %v607 = vadd.f32 0.0, %v606
    %608 = vmatmul.f32.gmra.mxu0 %v85
    %v609 = vpop.f32.mrf.mxu0
    %v610 = vadd.f32 0.0, %v609
    %611 = vmatmul.f32.gmra.mxu0 %v86
    %v612 = vpop.f32.mrf.mxu0
    %v613 = vadd.f32 0.0, %v612
    %614 = vmatmul.f32.gmra.mxu0 %v87
    %v615 = vpop.f32.mrf.mxu0
    %v616 = vadd.f32 0.0, %v615
    %617 = vmatmul.f32.gmra.mxu0 %v88
    %v618 = vpop.f32.mrf.mxu0
    %v619 = vadd.f32 0.0, %v618
    %620 = vmatmul.f32.gmra.mxu0 %v89
    %v621 = vpop.f32.mrf.mxu0
    %v622 = vadd.f32 0.0, %v621
    %623 = vmatmul.f32.gmra.mxu0 %v90
    %v624 = vpop.f32.mrf.mxu0
    %v625 = vadd.f32 0.0, %v624
    %626 = vmatmul.f32.gmra.mxu0 %v91
    %v627 = vpop.f32.mrf.mxu0
    %v628 = vadd.f32 0.0, %v627
    %629 = vmatmul.f32.gmra.mxu0 %v92
    %v630 = vpop.f32.mrf.mxu0
    %v631 = vadd.f32 0.0, %v630
    %632 = vmatmul.f32.gmra.mxu0 %v93
    %v633 = vpop.f32.mrf.mxu0
    %v634 = vadd.f32 0.0, %v633
    %635 = vdwg.mxu0
    %v636 = vmul.f32 %v277, %v589
    %v637 = vmul.f32 %v278, %v592
    %v638 = vmul.f32 %v279, %v595
    %v639 = vmul.f32 %v280, %v598
    %v640 = vmul.f32 %v281, %v601
    %v641 = vmul.f32 %v282, %v604
    %v642 = vmul.f32 %v283, %v607
    %v643 = vmul.f32 %v284, %v610
    %v644 = vmul.f32 %v285, %v613
    %v645 = vmul.f32 %v286, %v616
    %v646 = vmul.f32 %v287, %v619
    %v647 = vmul.f32 %v288, %v622
    %v648 = vmul.f32 %v289, %v625
    %v649 = vmul.f32 %v290, %v628
    %v650 = vmul.f32 %v291, %v631
    %v651 = vmul.f32 %v292, %v634
    %652 = vadd.xlane.f32.xlu0 %v507
    %v653 = vpop.xlane.xlu0 %652
    %654 = vadd.xlane.f32.xlu0 %v508
    %v655 = vpop.xlane.xlu0 %654
    %656 = vadd.xlane.f32.xlu0 %v509
    %v657 = vpop.xlane.xlu0 %656
    %658 = vadd.xlane.f32.xlu0 %v510
    %v659 = vpop.xlane.xlu0 %658
    %660 = vadd.xlane.f32.xlu0 %v511
    %v661 = vpop.xlane.xlu0 %660
    %662 = vadd.xlane.f32.xlu0 %v512
    %v663 = vpop.xlane.xlu0 %662
    %664 = vadd.xlane.f32.xlu0 %v513
    %v665 = vpop.xlane.xlu0 %664
    %666 = vadd.xlane.f32.xlu0 %v514
    %v667 = vpop.xlane.xlu0 %666
    %668 = vadd.xlane.f32.xlu0 %v515
    %v669 = vpop.xlane.xlu0 %668
    %670 = vadd.xlane.f32.xlu0 %v516
    %v671 = vpop.xlane.xlu0 %670
    %672 = vadd.xlane.f32.xlu0 %v517
    %v673 = vpop.xlane.xlu0 %672
    %674 = vadd.xlane.f32.xlu0 %v518
    %v675 = vpop.xlane.xlu0 %674
    %676 = vadd.xlane.f32.xlu0 %v519
    %v677 = vpop.xlane.xlu0 %676
    %678 = vadd.xlane.f32.xlu0 %v520
    %v679 = vpop.xlane.xlu0 %678
    %680 = vadd.xlane.f32.xlu0 %v521
    %v681 = vpop.xlane.xlu0 %680
    %682 = vadd.xlane.f32.xlu0 %v522
    %v683 = vpop.xlane.xlu0 %682
    %vm684 = vcmask 7168
    %v685 = vsel %vm684, %v653, 0.0
    %v686 = vsel %vm684, %v655, 0.0
    %v687 = vadd.f32 %v685, %v686
    %v688 = vsel %vm684, %v657, 0.0
    %v689 = vadd.f32 %v687, %v688
    %v690 = vsel %vm684, %v659, 0.0
    %v691 = vadd.f32 %v689, %v690
    %v692 = vsel %vm684, %v661, 0.0
    %v693 = vadd.f32 %v691, %v692
    %v694 = vsel %vm684, %v663, 0.0
    %v695 = vadd.f32 %v693, %v694
    %v696 = vsel %vm684, %v665, 0.0
    %v697 = vadd.f32 %v695, %v696
    %v698 = vsel %vm684, %v667, 0.0
    %v699 = vadd.f32 %v697, %v698
    %v700 = vsel %vm684, %v669, 0.0
    %v701 = vadd.f32 %v699, %v700
    %v702 = vsel %vm684, %v671, 0.0
    %v703 = vadd.f32 %v701, %v702
    %v704 = vsel %vm684, %v673, 0.0
    %v705 = vadd.f32 %v703, %v704
    %v706 = vsel %vm684, %v675, 0.0
    %v707 = vadd.f32 %v705, %v706
    %v708 = vsel %vm684, %v677, 0.0
    %v709 = vadd.f32 %v707, %v708
    %v710 = vsel %vm684, %v679, 0.0
    %v711 = vadd.f32 %v709, %v710
    %v712 = vsel %vm684, %v681, 0.0
    %v713 = vadd.f32 %v711, %v712
    %v714 = vsel %vm684, %v683, 0.0
    %v715 = vadd.f32 %v713, %v714
    %716 = vadd.xlane.f32.xlu0 %v715
    %v717 = vpop.xlane.xlu0 %716
    %v718 = vrot.slane %v717, 4
    %v719 = vadd.f32 %v717, %v718
    %v720 = vrot.slane %v719, 2
    %v721 = vadd.f32 %v719, %v720
    %v722 = vrot.slane %v721, 1
    %v723 = vadd.f32 %v721, %v722
    %s724 = vtos %v723
    %s725 = smax.f32 %s724, 1.0
    %v726 = vstv %s725
    %v727 = vrcp.pop %v726
    %v728 = vmul.f32 %v726, %v727
    %v729 = vsub.f32 1.0, %v728
    %v730 = vmul.f32 %v727, %v729
    %v731 = vadd.f32 %v727, %v730
    %vm732 = vweird.f32 %v726
    %vm733 = vweird.f32 %v727
    %vm734 = vmor %vm732, %vm733
    %v735 = vsel %vm734, %v727, %v731
    %v736 = vand.u32 2147483647, %v726
    %vm737 = vcmp.eq.f32.partialorder %v736, 8.507059e+37
    %v738 = vand.u32 %v726, 2147483648
    %v739 = vor.u32 1.1754944e-38, %v738
    %v740 = vsel %vm737, %v739, %v735
    %s741 = vtos %v740
    %s742 = smul.f32 25.0, %s741
    %v743 = vstv %s742
    %v744 = vmul.f32 %v743, %v555
    %v745 = vmul.f32 %v743, %v556
    %v746 = vmul.f32 %v743, %v557
    %v747 = vmul.f32 %v743, %v558
    %v748 = vmul.f32 %v743, %v559
    %v749 = vmul.f32 %v743, %v560
    %v750 = vmul.f32 %v743, %v561
    %v751 = vmul.f32 %v743, %v562
    %v752 = vmul.f32 %v743, %v563
    %v753 = vmul.f32 %v743, %v564
    %v754 = vmul.f32 %v743, %v565
    %v755 = vmul.f32 %v743, %v566
    %v756 = vmul.f32 %v743, %v567
    %v757 = vmul.f32 %v743, %v568
    %v758 = vmul.f32 %v743, %v569
    %v759 = vmul.f32 %v743, %v570
    %v760 = vmul.f32 %v636, 0.02
    %v761 = vmul.f32 %v637, 0.02
    %v762 = vmul.f32 %v638, 0.02
    %v763 = vmul.f32 %v639, 0.02
    %v764 = vmul.f32 %v640, 0.02
    %v765 = vmul.f32 %v641, 0.02
    %v766 = vmul.f32 %v642, 0.02
    %v767 = vmul.f32 %v643, 0.02
    %v768 = vmul.f32 %v644, 0.02
    %v769 = vmul.f32 %v645, 0.02
    %v770 = vmul.f32 %v646, 0.02
    %v771 = vmul.f32 %v647, 0.02
    %v772 = vmul.f32 %v648, 0.02
    %v773 = vmul.f32 %v649, 0.02
    %v774 = vmul.f32 %v650, 0.02
    %v775 = vmul.f32 %v651, 0.02
    %v776 = vadd.f32 %v744, %v760
    %v777 = vadd.f32 %v745, %v761
    %v778 = vadd.f32 %v746, %v762
    %v779 = vadd.f32 %v747, %v763
    %v780 = vadd.f32 %v748, %v764
    %v781 = vadd.f32 %v749, %v765
    %v782 = vadd.f32 %v750, %v766
    %v783 = vadd.f32 %v751, %v767
    %v784 = vadd.f32 %v752, %v768
    %v785 = vadd.f32 %v753, %v769
    %v786 = vadd.f32 %v754, %v770
    %v787 = vadd.f32 %v755, %v771
    %v788 = vadd.f32 %v756, %v772
    %v789 = vadd.f32 %v757, %v773
    %v790 = vadd.f32 %v758, %v774
    %v791 = vadd.f32 %v759, %v775
    %v792 = vadd.f32 %v776, %v777
    %v793 = vadd.f32 %v792, %v778
    %v794 = vadd.f32 %v793, %v779
    %v795 = vadd.f32 %v794, %v780
    %v796 = vadd.f32 %v795, %v781
    %v797 = vadd.f32 %v796, %v782
    %v798 = vadd.f32 %v797, %v783
    %v799 = vadd.f32 %v798, %v784
    %v800 = vadd.f32 %v799, %v785
    %v801 = vadd.f32 %v800, %v786
    %v802 = vadd.f32 %v801, %v787
    %v803 = vadd.f32 %v802, %v788
    %v804 = vadd.f32 %v803, %v789
    %v805 = vadd.f32 %v804, %v790
    %v806 = vadd.f32 %v805, %v791
    %807 = vadd.xlane.f32.xlu0 %v806
    %v808 = vpop.xlane.xlu0 %807
    %v809 = vrot.slane %v808, 4
    %v810 = vadd.f32 %v808, %v809
    %v811 = vrot.slane %v810, 2
    %v812 = vadd.f32 %v810, %v811
    %v813 = vrot.slane %v812, 1
    %v814 = vadd.f32 %v812, %v813
    %s815 = vtos %v814
    %s816 = scalar_lea.smem [#allocation8], 0
    %817 = sst [smem:[%s816]] %s815
    // Predicated region
    $region26: #{forward.1} parent=1 // pred_check
      _
    $region27: #{forward.1} parent=1 // pred_check_branch
      %819 = sbr.rel (0) target = $region29
    $region28: #{forward.1} parent=1 // pred_region
      %821 = vsyncadd [#allocation4], 0
      %s823 = sshll.u32 %s3, 4
      %s824 = int_to_ptr.hbm [resolvable:$true] %s823
      %826 = dma.smem_to_hbm [#allocation8], 16, %s824, [#allocation4]
    $region29: #{forward.1} parent=1 // pred_fallthru
      _
    // Predicated region
    $region30: #{forward.1} parent=1 // pred_check
      _
    $region31: #{forward.1} parent=1 // pred_check_branch
      %828 = sbr.rel (0) target = $region33
    $region32: #{forward.1} parent=1 // pred_region
      %830 = dma.done [#allocation4], 16
    $region33: #{forward.1} parent=1 // pred_fallthru
      _
    %831 = sfence
    %832 = vsyncpa [#allocation3], 1
    %833 = vsyncpa [#allocation6], 1
    %834 = vsyncpa [#allocation4], 1

</llo_original>
